<compile_context>
chip_gen: v7x
topology: tpu7x:2x2x1
jax: 0.10.0
libtpu: 0.0.40
codegen_flags: <defaults>
</compile_context>

<pallas_src>
import jax
import jax.numpy as jnp
import numpy as np
from jax.experimental import pallas as pl
from jax.experimental.pallas import tpu as pltpu

EPS = 1e-5           # LayerNorm eps (torch default in the module; added to std)
NEG_SLOPE = 0.01     # F.leaky_relu default negative_slope


def _round_up(x, m):
    return (x + m - 1) // m * m


def _im2col_3d(x, kernel, stride):
    """x: (N, C, D, H, W) -> patches (N, K, P).

    K is ordered (C, kd, kh, kw) to match weight.reshape(C_out, K);
    P is ordered (Do, Ho, Wo) and is the LANE axis (no final transpose).
    """
    N, C, D, H, W = x.shape
    kd, kh, kw = kernel
    sd, sh, sw = stride
    Do = (D - kd) // sd + 1
    Ho = (H - kh) // sh + 1
    Wo = (W - kw) // sw + 1
    cols = []
    for i in range(kd):
        for j in range(kh):
            for k in range(kw):
                sl = x[:, :, i:i + sd * Do:sd, j:j + sh * Ho:sh, k:k + sw * Wo:sw]
                cols.append(sl)                                    # (N, C, Do, Ho, Wo)
    pat = jnp.stack(cols, axis=2)                                  # (N, C, kd*kh*kw, Do, Ho, Wo)
    pat = pat.reshape(N, C * kd * kh * kw, Do * Ho * Wo)           # (N, K, P)
    return pat, (Do, Ho, Wo)


def _make_kernel(tp, p_true, m_elems):
    """Build the fused conv-GEMM + per-sample LayerNorm + leaky_relu kernel."""
    inv_m = 1.0 / float(m_elems)         # true element count (padding excluded)
    inv_m1 = 1.0 / float(m_elems - 1)    # unbiased estimator, torch .std(1)

    def kernel(patch_ref, w_ref, prm_ref, o_ref, sum_ref, ssq_ref):
        # patch_ref: (1, K_pad, TP)   im2col tile of one sample (lane axis = P)
        # w_ref    : (C_out, K_pad)   reshaped + zero-padded conv weight
        # prm_ref  : (C_out, 3)       columns = [bias, gamma, beta]
        # o_ref    : (1, C_out, TP)   lane-dense, channel-major output tile
        # sum_ref / ssq_ref : (C_out, 1) VMEM scratch, persist across the grid
        phase = pl.program_id(1)     # 0: accumulate LN stats, 1: normalize + store
        p = pl.program_id(2)         # P-tile index

        bias = prm_ref[:, 0:1]                                         # (C, 1)
        conv = jnp.dot(w_ref[...], patch_ref[0],
                       preferred_element_type=jnp.float32) + bias      # (C, TP) f32

        @pl.when(jnp.logical_and(phase == 0, p == 0))
        def _():
            sum_ref[...] = jnp.zeros_like(sum_ref)
            ssq_ref[...] = jnp.zeros_like(ssq_ref)

        @pl.when(phase == 0)
        def _():
            # Mask out zero-padded P columns (they hold only the bias) so the
            # per-sample mean/std are computed over the true element count.
            col = jax.lax.broadcasted_iota(jnp.int32, conv.shape, 1) + p * tp
            valid = col < p_true
            masked = jnp.where(valid, conv, 0.0)
            sum_ref[...] = sum_ref[...] + jnp.sum(masked, axis=1, keepdims=True)
            ssq_ref[...] = ssq_ref[...] + jnp.sum(masked * masked, axis=1, keepdims=True)

        @pl.when(phase == 1)
        def _():
            gamma = prm_ref[:, 1:2]                                    # (C, 1)
            beta = prm_ref[:, 2:3]                                     # (C, 1)
            s = jnp.sum(sum_ref[...], axis=0, keepdims=True)           # (1, 1)
            ss = jnp.sum(ssq_ref[...], axis=0, keepdims=True)          # (1, 1)
            mean = s * inv_m                                           # (1, 1)
            var = (ss - s * mean) * inv_m1                             # unbiased
            denom = jnp.sqrt(var) + EPS        # eps added to std (module semantics)
            denom_c = denom + jnp.zeros_like(gamma)                    # (C, 1)
            inv = pl.reciprocal(denom_c, approx=True)                  # EUP slot
            inv = inv * (2.0 - denom_c * inv)                          # 1 Newton step
            scale = gamma * inv                                        # (C, 1)
            shift = beta - scale * mean                                # (C, 1)
            y = conv * scale + shift                                   # (C, TP)
            o_ref[0] = jnp.where(y > 0, y, NEG_SLOPE * y)              # leaky_relu

    return kernel


def discriminator_block(x, weight, bias, gamma, beta, kernel, stride,
                        *, compute_dtype=jnp.float32, max_p_tile=1024):
    """x: (N, C_in, D, H, W) f32; weight: (C_out, C_in, kD, kH, kW).

    compute_dtype may be jnp.bfloat16 on v5e/v6e to halve patch/weight bytes
    for the MXU (post-matmul math stays f32); defaults to f32 for exactness.
    """
    N = x.shape[0]
    C_out = weight.shape[0]
    patches, (Do, Ho, Wo) = _im2col_3d(x, kernel, stride)          # (N, K, P)
    K, P = patches.shape[1], patches.shape[2]

    # --- tiling: pad K to a multiple of 128; pick a lane-dense P tile (multiple
    # of 128) that keeps the double-buffered blocks inside a conservative VMEM
    # budget (valid on v5e/v6e/v7x); pad P up to a multiple of that tile.
    K_pad = _round_up(K, 128)
    bytes_per = np.dtype(compute_dtype).itemsize
    vmem_budget = 16 * 2**20
    p_cap = _round_up(P, 128)
    tp = 128
    while True:
        nxt = tp + 128
        need = (2 * K_pad * nxt * bytes_per      # double-buffered patch tile
                + 2 * C_out * nxt * 4            # double-buffered output tile
                + K_pad * C_out * bytes_per)     # resident weight
        if nxt > max_p_tile or nxt > p_cap or need > vmem_budget:
            break
        tp = nxt
    TP = min(tp, p_cap)
    P_pad = _round_up(P, TP)
    PT = P_pad // TP

    patches = jnp.pad(patches, ((0, 0), (0, K_pad - K), (0, P_pad - P)))
    patches = patches.astype(compute_dtype)

    w_mat = weight.reshape(C_out, K)                               # same K order as im2col
    w_mat = jnp.pad(w_mat, ((0, 0), (0, K_pad - K))).astype(compute_dtype)

    # bias / gamma / beta packed into one (C_out, 3) f32 operand.
    params = jnp.stack([bias, gamma, beta], axis=1).astype(jnp.float32)

    m_elems = C_out * P
    kfn = _make_kernel(TP, P, m_elems)

    flops = 2 * 2 * N * C_out * K_pad * P_pad        # conv GEMM runs in both phases
    bytes_accessed = (2 * patches.size * bytes_per   # patch tiles read twice (2 phases)
                      + w_mat.size * bytes_per
                      + params.size * 4
                      + N * C_out * P_pad * 4)       # output written once

    out = pl.pallas_call(
        kfn,
        out_shape=jax.ShapeDtypeStruct((N, C_out, P_pad), jnp.float32),
        grid_spec=pltpu.PrefetchScalarGridSpec(
            num_scalar_prefetch=0,
            grid=(N, 2, PT),            # batch | phase {stats, write} | P tiles
            in_specs=[
                pl.BlockSpec((1, K_pad, TP), lambda n, s, p: (n, 0, p)),
                pl.BlockSpec((C_out, K_pad), lambda n, s, p: (0, 0)),
                pl.BlockSpec((C_out, 3), lambda n, s, p: (0, 0)),
            ],
            # During the stats phase (s == 0) the output window is parked on
            # block 0, so no unwritten block is ever flushed; the write phase
            # walks the P tiles normally (each block is written exactly once).
            out_specs=pl.BlockSpec((1, C_out, TP), lambda n, s, p: (n, 0, p * s)),
            scratch_shapes=[
                pltpu.VMEM((C_out, 1), jnp.float32),   # per-channel running sum
                pltpu.VMEM((C_out, 1), jnp.float32),   # per-channel running sum of squares
            ],
        ),
        compiler_params=pltpu.CompilerParams(
            dimension_semantics=("parallel", "arbitrary", "arbitrary"),
            vmem_limit_bytes=32 * 2**20,
        ),
        cost_estimate=pl.CostEstimate(
            flops=int(flops),
            transcendentals=int(2 * N * PT),
            bytes_accessed=int(bytes_accessed)),
    )(patches, w_mat, params)

    # Kernel output is already channel-major: slice off the P padding, reshape.
    out = out[:, :, :P].reshape(N, C_out, Do, Ho, Wo)
    return out


def _reference(x, weight, bias, gamma, beta, kernel, stride):
    """Plain-JAX reference matching the PyTorch module semantics."""
    conv = jax.lax.conv_general_dilated(
        x, weight, window_strides=stride, padding="VALID",
        dimension_numbers=("NCDHW", "OIDHW", "NCDHW"))
    conv = conv + bias[None, :, None, None, None]
    N = conv.shape[0]
    flat = conv.reshape(N, -1)
    mean = flat.mean(axis=1)
    std = flat.std(axis=1, ddof=1)
    bshape = (N, 1, 1, 1, 1)
    y = (conv - mean.reshape(bshape)) / (std.reshape(bshape) + EPS)
    y = gamma[None, :, None, None, None] * y + beta[None, :, None, None, None]
    return jnp.where(y > 0, y, NEG_SLOPE * y)


if __name__ == "__main__":
    key = jax.random.PRNGKey(0)
    k_x, k_w, k_b, k_g = jax.random.split(key, 4)

    # Small shapes consistent with the module: Conv3d(in_dim=4, out_dim=8, kernel=3, stride=1)
    N, C_in, C_out = 2, 4, 8
    D = H = W = 8
    kernel = (3, 3, 3)
    stride = (1, 1, 1)

    x = jax.random.normal(k_x, (N, C_in, D, H, W), dtype=jnp.float32)
    weight = 0.1 * jax.random.normal(k_w, (C_out, C_in) + kernel, dtype=jnp.float32)
    bias = 0.1 * jax.random.normal(k_b, (C_out,), dtype=jnp.float32)
    gamma = jax.random.uniform(k_g, (C_out,), dtype=jnp.float32)   # ~ torch .uniform_()
    beta = jnp.zeros((C_out,), dtype=jnp.float32)

    # max_p_tile=128 keeps two P tiles at this toy size so the cross-tile
    # LayerNorm statistic accumulation path is exercised.
    out = discriminator_block(x, weight, bias, gamma, beta, kernel, stride,
                              max_p_tile=128)
    out = jax.block_until_ready(out)

    ref = _reference(x, weight, bias, gamma, beta, kernel, stride)
    np.testing.assert_allclose(np.asarray(out), np.asarray(ref), rtol=1e-4, atol=1e-4)

    print("KERNEL_OK")
</pallas_src>

<mosaic_0001>
module attributes {stable_mosaic.version = 11 : i64} {
  func.func @kernel(%arg0: i32, %arg1: i32, %arg2: i32, %arg3: memref<1x128x128xf32, #tpu.memory_space<vmem>>, %arg4: memref<8x128xf32, #tpu.memory_space<vmem>>, %arg5: memref<8x3xf32, #tpu.memory_space<vmem>>, %arg6: memref<1x8x128xf32, #tpu.memory_space<vmem>>, %arg7: memref<8x1xf32, #tpu.memory_space<vmem>>, %arg8: memref<8x1xf32, #tpu.memory_space<vmem>>) attributes {dimension_semantics = [#tpu.dimension_semantics<parallel>, #tpu.dimension_semantics<arbitrary>, #tpu.dimension_semantics<arbitrary>], iteration_bounds = array<i64: 2, 2, 2>, scalar_prefetch = 0 : i64, scratch_operands = 2 : i64, tpu.core_type = #tpu.core_type<tc>, window_params = [{transform_indices = @transform_0, window_bounds = array<i64: 1, 128, 128>}, {pipeline_mode = #tpu.pipeline_mode<synchronous>, transform_indices = @transform_1, window_bounds = array<i64: 8, 128>}, {pipeline_mode = #tpu.pipeline_mode<synchronous>, transform_indices = @transform_2, window_bounds = array<i64: 8, 3>}, {transform_indices = @transform_3, window_bounds = array<i64: 1, 8, 128>}]} {
    %c0 = arith.constant 0 : index
    %c0_0 = arith.constant 0 : index
    %0 = vector.load %arg5[%c0, %c0_0] : memref<8x3xf32, #tpu.memory_space<vmem>>, vector<8x1xf32>
    %c0_1 = arith.constant 0 : index
    %c0_2 = arith.constant 0 : index
    %1 = vector.load %arg4[%c0_1, %c0_2] : memref<8x128xf32, #tpu.memory_space<vmem>>, vector<8x128xf32>
    %c0_3 = arith.constant 0 : index
    %c0_4 = arith.constant 0 : index
    %c0_5 = arith.constant 0 : index
    %2 = vector.load %arg3[%c0_3, %c0_4, %c0_5] : memref<1x128x128xf32, #tpu.memory_space<vmem>>, vector<1x128x128xf32>
    %3 = vector.shape_cast %2 : vector<1x128x128xf32> to vector<128x128xf32>
    %cst = arith.constant dense<0.000000e+00> : vector<8x128xf32>
    %4 = tpu.matmul %1, %3, %cst {dimension_numbers = #tpu.dot_dimension_numbers<[1], [0], [0], [1], [0, 0, 1, 1], [], []>} : vector<8x128xf32>, vector<128x128xf32>, vector<8x128xf32> -> vector<8x128xf32>
    %5 = vector.broadcast %0 : vector<8x1xf32> to vector<8x128xf32>
    %6 = arith.addf %4, %5 : vector<8x128xf32>
    %c0_i32 = arith.constant 0 : i32
    %7 = arith.cmpi eq, %arg1, %c0_i32 : i32
    %c0_i32_6 = arith.constant 0 : i32
    %8 = arith.cmpi eq, %arg2, %c0_i32_6 : i32
    %9 = arith.andi %7, %8 : i1
    %10 = arith.extui %9 : i1 to i32
    %c0_i32_7 = arith.constant 0 : i32
    %11 = arith.cmpi ne, %10, %c0_i32_7 : i32
    scf.if %11 {
      %cst_11 = arith.constant 0.000000e+00 : f32
      %18 = vector.broadcast %cst_11 : f32 to vector<8x1xf32>
      %c0_12 = arith.constant 0 : index
      %c0_13 = arith.constant 0 : index
      %19 = vector.load %arg7[%c0_12, %c0_13] : memref<8x1xf32, #tpu.memory_space<vmem>>, vector<8x1xf32>
      tpu.vector_store %arg7[%c0_12, %c0_13], %18 {strides = array<i32>} : memref<8x1xf32, #tpu.memory_space<vmem>>, vector<8x1xf32>,
      %cst_14 = arith.constant 0.000000e+00 : f32
      %20 = vector.broadcast %cst_14 : f32 to vector<8x1xf32>
      %c0_15 = arith.constant 0 : index
      %c0_16 = arith.constant 0 : index
      %21 = vector.load %arg8[%c0_15, %c0_16] : memref<8x1xf32, #tpu.memory_space<vmem>>, vector<8x1xf32>
      tpu.vector_store %arg8[%c0_15, %c0_16], %20 {strides = array<i32>} : memref<8x1xf32, #tpu.memory_space<vmem>>, vector<8x1xf32>,
    } else {
    }
    %c0_i32_8 = arith.constant 0 : i32
    %12 = arith.cmpi eq, %arg1, %c0_i32_8 : i32
    %13 = arith.extui %12 : i1 to i32
    %c0_i32_9 = arith.constant 0 : i32
    %14 = arith.cmpi ne, %13, %c0_i32_9 : i32
    scf.if %14 {
      %18 = tpu.iota {dimensions = array<i32: 1>} : vector<8x128xi32>
      %c128_i32 = arith.constant 128 : i32
      %19 = arith.muli %arg2, %c128_i32 : i32
      %20 = vector.broadcast %19 : i32 to vector<8x128xi32>
      %21 = arith.addi %18, %20 : vector<8x128xi32>
      %c216_i32 = arith.constant 216 : i32
      %22 = vector.broadcast %c216_i32 : i32 to vector<8x128xi32>
      %23 = arith.cmpi slt, %21, %22 : vector<8x128xi32>
      %cst_11 = arith.constant 0.000000e+00 : f32
      %24 = vector.broadcast %cst_11 : f32 to vector<8x128xf32>
      %25 = arith.select %23, %6, %24 : vector<8x128xi1>, vector<8x128xf32>
      %c0_12 = arith.constant 0 : index
      %c0_13 = arith.constant 0 : index
      %26 = vector.load %arg7[%c0_12, %c0_13] : memref<8x1xf32, #tpu.memory_space<vmem>>, vector<8x1xf32>
      %cst_14 = arith.constant dense<0.000000e+00> : vector<8xf32>
      %27 = vector.multi_reduction <add>, %25, %cst_14 [1] : vector<8x128xf32> to vector<8xf32>
      %28 = vector.shape_cast %27 : vector<8xf32> to vector<8x1xf32>
      %29 = arith.addf %26, %28 : vector<8x1xf32>
      %c0_15 = arith.constant 0 : index
      %c0_16 = arith.constant 0 : index
      %30 = vector.load %arg7[%c0_15, %c0_16] : memref<8x1xf32, #tpu.memory_space<vmem>>, vector<8x1xf32>
      tpu.vector_store %arg7[%c0_15, %c0_16], %29 {strides = array<i32>} : memref<8x1xf32, #tpu.memory_space<vmem>>, vector<8x1xf32>,
      %c0_17 = arith.constant 0 : index
      %c0_18 = arith.constant 0 : index
      %31 = vector.load %arg8[%c0_17, %c0_18] : memref<8x1xf32, #tpu.memory_space<vmem>>, vector<8x1xf32>
      %32 = arith.mulf %25, %25 : vector<8x128xf32>
      %cst_19 = arith.constant dense<0.000000e+00> : vector<8xf32>
      %33 = vector.multi_reduction <add>, %32, %cst_19 [1] : vector<8x128xf32> to vector<8xf32>
      %34 = vector.shape_cast %33 : vector<8xf32> to vector<8x1xf32>
      %35 = arith.addf %31, %34 : vector<8x1xf32>
      %c0_20 = arith.constant 0 : index
      %c0_21 = arith.constant 0 : index
      %36 = vector.load %arg8[%c0_20, %c0_21] : memref<8x1xf32, #tpu.memory_space<vmem>>, vector<8x1xf32>
      tpu.vector_store %arg8[%c0_20, %c0_21], %35 {strides = array<i32>} : memref<8x1xf32, #tpu.memory_space<vmem>>, vector<8x1xf32>,
    } else {
    }
    %c1_i32 = arith.constant 1 : i32
    %15 = arith.cmpi eq, %arg1, %c1_i32 : i32
    %16 = arith.extui %15 : i1 to i32
    %c0_i32_10 = arith.constant 0 : i32
    %17 = arith.cmpi ne, %16, %c0_i32_10 : i32
    scf.if %17 {
      %c0_11 = arith.constant 0 : index
      %c1 = arith.constant 1 : index
      %18 = vector.load %arg5[%c0_11, %c1] : memref<8x3xf32, #tpu.memory_space<vmem>>, vector<8x1xf32>
      %c0_12 = arith.constant 0 : index
      %c2 = arith.constant 2 : index
      %19 = vector.load %arg5[%c0_12, %c2] : memref<8x3xf32, #tpu.memory_space<vmem>>, vector<8x1xf32>
      %c0_13 = arith.constant 0 : index
      %c0_14 = arith.constant 0 : index
      %20 = vector.load %arg7[%c0_13, %c0_14] : memref<8x1xf32, #tpu.memory_space<vmem>>, vector<8x1xf32>
      %cst_15 = arith.constant dense<0.000000e+00> : vector<1xf32>
      %21 = vector.multi_reduction <add>, %20, %cst_15 [0] : vector<8x1xf32> to vector<1xf32>
      %22 = vector.shape_cast %21 : vector<1xf32> to vector<1x1xf32>
      %c0_16 = arith.constant 0 : index
      %c0_17 = arith.constant 0 : index
      %23 = vector.load %arg8[%c0_16, %c0_17] : memref<8x1xf32, #tpu.memory_space<vmem>>, vector<8x1xf32>
      %cst_18 = arith.constant dense<0.000000e+00> : vector<1xf32>
      %24 = vector.multi_reduction <add>, %23, %cst_18 [0] : vector<8x1xf32> to vector<1xf32>
      %25 = vector.shape_cast %24 : vector<1xf32> to vector<1x1xf32>
      %cst_19 = arith.constant 5.78703708E-4 : f32
      %26 = vector.broadcast %cst_19 : f32 to vector<1x1xf32>
      %27 = arith.mulf %22, %26 : vector<1x1xf32>
      %28 = arith.mulf %22, %27 : vector<1x1xf32>
      %29 = arith.subf %25, %28 : vector<1x1xf32>
      %cst_20 = arith.constant 5.7903881E-4 : f32
      %30 = vector.broadcast %cst_20 : f32 to vector<1x1xf32>
      %31 = arith.mulf %29, %30 : vector<1x1xf32>
      %32 = math.sqrt %31 : vector<1x1xf32>
      %cst_21 = arith.constant 9.99999974E-6 : f32
      %33 = vector.broadcast %cst_21 : f32 to vector<1x1xf32>
      %34 = arith.addf %32, %33 : vector<1x1xf32>
      %cst_22 = arith.constant 0.000000e+00 : f32
      %35 = vector.broadcast %cst_22 : f32 to vector<8x1xf32>
      %36 = vector.broadcast %34 : vector<1x1xf32> to vector<8x1xf32>
      %37 = arith.addf %36, %35 : vector<8x1xf32>
      %38 = tpu.reciprocal %37 {approx = true} : vector<8x1xf32> -> vector<8x1xf32>
      %39 = arith.mulf %37, %38 : vector<8x1xf32>
      %cst_23 = arith.constant 2.000000e+00 : f32
      %40 = vector.broadcast %cst_23 : f32 to vector<8x1xf32>
      %41 = arith.subf %40, %39 : vector<8x1xf32>
      %42 = arith.mulf %38, %41 : vector<8x1xf32>
      %43 = arith.mulf %18, %42 : vector<8x1xf32>
      %44 = vector.broadcast %27 : vector<1x1xf32> to vector<8x1xf32>
      %45 = arith.mulf %43, %44 : vector<8x1xf32>
      %46 = arith.subf %19, %45 : vector<8x1xf32>
      %47 = vector.broadcast %43 : vector<8x1xf32> to vector<8x128xf32>
      %48 = arith.mulf %6, %47 : vector<8x128xf32>
      %49 = vector.broadcast %46 : vector<8x1xf32> to vector<8x128xf32>
      %50 = arith.addf %48, %49 : vector<8x128xf32>
      %cst_24 = arith.constant 0.000000e+00 : f32
      %51 = vector.broadcast %cst_24 : f32 to vector<8x128xf32>
      %52 = arith.cmpf ogt, %50, %51 : vector<8x128xf32>
      %cst_25 = arith.constant 0.00999999977 : f32
      %53 = vector.broadcast %cst_25 : f32 to vector<8x128xf32>
      %54 = arith.mulf %53, %50 : vector<8x128xf32>
      %55 = arith.select %52, %50, %54 : vector<8x128xi1>, vector<8x128xf32>
      %c0_26 = arith.constant 0 : index
      %c0_27 = arith.constant 0 : index
      %c0_28 = arith.constant 0 : index
      %56 = vector.load %arg6[%c0_26, %c0_27, %c0_28] : memref<1x8x128xf32, #tpu.memory_space<vmem>>, vector<1x8x128xf32>
      %57 = vector.shape_cast %56 : vector<1x8x128xf32> to vector<8x128xf32>
      %58 = vector.shape_cast %55 : vector<8x128xf32> to vector<1x8x128xf32>
      tpu.vector_store %arg6[%c0_26, %c0_27, %c0_28], %58 {strides = array<i32>} : memref<1x8x128xf32, #tpu.memory_space<vmem>>, vector<1x8x128xf32>,
    } else {
    }
    return
  }
  func.func @transform_0(%arg0: i32, %arg1: i32, %arg2: i32) -> (i32, i32, i32) {
    %c0_i32 = arith.constant 0 : i32
    %c0_i32_0 = arith.constant 0 : i32
    return %arg0, %c0_i32, %arg2 : i32, i32, i32
  }
  func.func @transform_1(%arg0: i32, %arg1: i32, %arg2: i32) -> (i32, i32) {
    %c0_i32 = arith.constant 0 : i32
    %c0_i32_0 = arith.constant 0 : i32
    %c0_i32_1 = arith.constant 0 : i32
    return %c0_i32, %c0_i32_0 : i32, i32
  }
  func.func @transform_2(%arg0: i32, %arg1: i32, %arg2: i32) -> (i32, i32) {
    %c0_i32 = arith.constant 0 : i32
    %c0_i32_0 = arith.constant 0 : i32
    %c0_i32_1 = arith.constant 0 : i32
    return %c0_i32, %c0_i32_0 : i32, i32
  }
  func.func @transform_3(%arg0: i32, %arg1: i32, %arg2: i32) -> (i32, i32, i32) {
    %0 = arith.muli %arg2, %arg1 : i32
    %c0_i32 = arith.constant 0 : i32
    %c0_i32_0 = arith.constant 0 : i32
    return %arg0, %c0_i32, %0 : i32, i32, i32
  }
}

</mosaic_0001>

<llo_original>
// kernel: tpu_custom_call.1
$region0: #{tpu_custom_call.1}
  #allocation0 [shape = 'u32[]', space=smem, size = 0x4, offset = 0x4, fixed_abs, tag = 'smem constant byte address 0x4 - core index']
  #allocation1 [shape = 'u32[144,128]{1,0:T(1,128)}', space=vmem, size = 0x12000, scoped, tag = 'internal scratch']
  #allocation2 [shape = 'f32[8,1]{1,0:T(8,128)}', space=vmem, size = 0x1000, scoped, tag = 'scratch operand']
  #allocation3 [shape = 'f32[8,1]{1,0:T(8,128)}', space=vmem, size = 0x1000, scoped, tag = 'scratch operand']
  %s0 = inlined_call_operand.hbm [shape: f32[2,128,256], index: 0, kind: input, shape index: {}]
  %s1 = inlined_call_operand.vmem [shape: f32[8,128], index: 1, kind: input, shape index: {}]
  %s2 = inlined_call_operand.vmem [shape: f32[8,3], index: 2, kind: input, shape index: {}]
  %s3 = inlined_call_operand.hbm [shape: f32[2,8,256], index: 3, kind: output, shape index: {}]
  %s4 = sld [smem:[#allocation0]]
  $region61: #{tpu_custom_call.1} parent=0
    _
  %s6 = ssub.s32 1, %s4
  %s7 = scalar_select 0, %s6, %s4
  $region1: #{tpu_custom_call.1} parent=0
    #allocation4 [shape = 'u8[131072]{0}', space=vmem, size = 0x20000, scoped, tag = 'input window, operand 0']
    #allocation5 [shape = 's32[2]{0}', space=sflag, size = 0x8, scoped, tag = 'scoped memory for tpu_custom_call.1']
    #allocation6 [shape = 's32[2]{0}', space=sflag, size = 0x8, scoped, tag = 'scoped memory for tpu_custom_call.1']
    #allocation7 [shape = 'u8[8192]{0}', space=vmem, size = 0x2000, scoped, tag = 'output window, operand 0']
    %8 = vsyncpa [#allocation5], 0
    %s9 = scalar_lea.sflag [#allocation5], 1
    %10 = vsyncpa %s9, 0
    %11 = vsyncpa [#allocation6], 0
    %s12 = scalar_lea.sflag [#allocation6], 1
    %13 = vsyncpa %s12, 0
    loop: start=0, step=1, limit=10
    $region2: #{tpu_custom_call.1} parent=1 // loop_pre_header
      _
    $region3: #{tpu_custom_call.1} parent=1 // loop_header
      %s15 = sphi 0, %s19
      %p16 = scmp.ge.s32.totalorder %s15, 10
      %s22 = sphi 0, %s41
      %s23 = sphi 0, %s37
      %s24 = sphi 0, %s33
      %s25 = sphi 0, %s22
      %s26 = sphi 0, %s23
      %s27 = sphi 0, %s24
      %s28 = sphi 0, %s25
      %s29 = sphi 0, %s26
      %s30 = sphi 0, %s27
      %s46 = sphi 0, %s48
      %s49 = sphi 0, %s46
      %s50 = sphi 0, %s49
      %s66 = sphi 0, %s50
      %s70 = sphi 0, %s70
      %s72 = sphi 0, %s70
      %s73 = sphi 0, %s72
      %s87 = sphi 0, %s73
      %s91 = sphi 0, %s91
      %s93 = sphi 0, %s91
      %s94 = sphi 0, %s93
      %s108 = sphi 0, %s94
      %s118 = sphi 0, %s120
      %s121 = sphi 0, %s118
      %s122 = sphi 0, %s121
      %s138 = sphi 0, %s122
    $region4: #{tpu_custom_call.1} parent=1 // loop_header_branch
      %18 = sbr.rel (%p16) target = $region8
    $region5: #{tpu_custom_call.1} parent=1 // loop_body
      %s20 = ssub.s32 %s15, 1
      %s21 = ssub.s32 %s15, 2
      %s31 = sadd.s32 1, %s24
      %p32 = scmp.ge.s32.totalorder %s31, 2
      %s33 = scalar_select %p32, 0, %s31
      %s34 = sadd.s32 1, %s23
      %s35 = scalar_select %p32, %s34, %s23
      %p36 = scmp.ge.s32.totalorder %s35, 2
      %s37 = scalar_select %p36, 0, %s35
      %s38 = sadd.s32 1, %s22
      %s39 = scalar_select %p36, %s38, %s22
      %p40 = scmp.ge.s32.totalorder %s39, 2
      %s41 = scalar_select %p40, 0, %s39
      %s42 = ssub.s32 %s22, %s41
      %s43 = ssub.s32 %s24, %s33
      %s44 = sor.u32 %s42, %s43
      %p45 = scmp.eq.s32.totalorder %s44, 0
      %s47 = sadd.s32 %s46, 1
      %s48 = scalar_select %p45, %s46, %s47
      %p51 = pneg %p45
      %p52 = scmp.eq.s32.totalorder %s15, 7
      %p53 = por %p51, %p52
      %p54 = scmp.ne.s32.totalorder %s46, %s49
      %p55 = scmp.eq.s32.totalorder %s15, 0
      %p56 = por %p54, %p55
      %p57 = scmp.ne.s32.totalorder %s46, %s49
      %p58 = scmp.eq.s32.totalorder %s20, 7
      %p59 = por %p57, %p58
      %p60 = scmp.ne.s32.totalorder %s49, %s50
      %p61 = scmp.eq.s32.totalorder %s20, 0
      %p62 = por %p60, %p61
      %p63 = scmp.ne.s32.totalorder %s49, %s50
      %p64 = scmp.eq.s32.totalorder %s21, 7
      %p65 = por %p63, %p64
      %p67 = scmp.ne.s32.totalorder %s50, %s66
      %p68 = scmp.eq.s32.totalorder %s21, 0
      %p69 = por %p67, %p68
      %s71 = sadd.s32 %s70, 1
      %p74 = scmp.eq.s32.totalorder %s15, 7
      %p75 = scmp.ne.s32.totalorder %s70, %s72
      %p76 = scmp.eq.s32.totalorder %s15, 0
      %p77 = por %p75, %p76
      %p78 = scmp.ne.s32.totalorder %s70, %s72
      %p79 = scmp.eq.s32.totalorder %s20, 7
      %p80 = por %p78, %p79
      %p81 = scmp.ne.s32.totalorder %s72, %s73
      %p82 = scmp.eq.s32.totalorder %s20, 0
      %p83 = por %p81, %p82
      %p84 = scmp.ne.s32.totalorder %s72, %s73
      %p85 = scmp.eq.s32.totalorder %s21, 7
      %p86 = por %p84, %p85
      %p88 = scmp.ne.s32.totalorder %s73, %s87
      %p89 = scmp.eq.s32.totalorder %s21, 0
      %p90 = por %p88, %p89
      %s92 = sadd.s32 %s91, 1
      %p95 = scmp.eq.s32.totalorder %s15, 7
      %p96 = scmp.ne.s32.totalorder %s91, %s93
      %p97 = scmp.eq.s32.totalorder %s15, 0
      %p98 = por %p96, %p97
      %p99 = scmp.ne.s32.totalorder %s91, %s93
      %p100 = scmp.eq.s32.totalorder %s20, 7
      %p101 = por %p99, %p100
      %p102 = scmp.ne.s32.totalorder %s93, %s94
      %p103 = scmp.eq.s32.totalorder %s20, 0
      %p104 = por %p102, %p103
      %p105 = scmp.ne.s32.totalorder %s93, %s94
      %p106 = scmp.eq.s32.totalorder %s21, 7
      %p107 = por %p105, %p106
      %p109 = scmp.ne.s32.totalorder %s94, %s108
      %p110 = scmp.eq.s32.totalorder %s21, 0
      %p111 = por %p109, %p110
      %s112 = smul.u32 %s24, %s23
      %s113 = smul.u32 %s33, %s37
      %s114 = ssub.s32 %s22, %s41
      %s115 = ssub.s32 %s112, %s113
      %s116 = sor.u32 %s114, %s115
      %p117 = scmp.eq.s32.totalorder %s116, 0
      %s119 = sadd.s32 %s118, 1
      %s120 = scalar_select %p117, %s118, %s119
      %p123 = pneg %p117
      %p124 = scmp.eq.s32.totalorder %s15, 7
      %p125 = por %p123, %p124
      %p126 = scmp.ne.s32.totalorder %s118, %s121
      %p127 = scmp.eq.s32.totalorder %s15, 0
      %p128 = por %p126, %p127
      %p129 = scmp.ne.s32.totalorder %s118, %s121
      %p130 = scmp.eq.s32.totalorder %s20, 7
      %p131 = por %p129, %p130
      %p132 = scmp.ne.s32.totalorder %s121, %s122
      %p133 = scmp.eq.s32.totalorder %s20, 0
      %p134 = por %p132, %p133
      %p135 = scmp.ne.s32.totalorder %s121, %s122
      %p136 = scmp.eq.s32.totalorder %s21, 7
      %p137 = por %p135, %p136
      %p139 = scmp.ne.s32.totalorder %s122, %s138
      %p140 = scmp.eq.s32.totalorder %s21, 0
      %p141 = por %p139, %p140
      %p142 = scmp.le.s32.totalorder 1, %s15
      %p143 = scmp.lt.s32.totalorder %s15, 9
      %p144 = pnand %p142, %p143
      %p145 = pneg %p144
      // Predicated region
      $region9: #{tpu_custom_call.1} parent=5 // pred_check
        _
      $region10: #{tpu_custom_call.1} parent=5 // pred_check_branch
        %147 = sbr.rel (%p144) target = $region12
      $region11: #{tpu_custom_call.1} parent=5 // pred_region
        %s148 = ssub.s32 %s15, 1
        // Predicated region
        $region13: #{tpu_custom_call.1} parent=11 // pred_check
          %p149 = pneg %p83
        $region14: #{tpu_custom_call.1} parent=11 // pred_check_branch
          %151 = sbr.rel (%p149) target = $region16
        $region15: #{tpu_custom_call.1} parent=11 // pred_region
          _
        $region16: #{tpu_custom_call.1} parent=11 // pred_fallthru
          _
        // Predicated region
        $region17: #{tpu_custom_call.1} parent=11 // pred_check
          %p152 = pneg %p104
        $region18: #{tpu_custom_call.1} parent=11 // pred_check_branch
          %154 = sbr.rel (%p152) target = $region20
        $region19: #{tpu_custom_call.1} parent=11 // pred_region
          _
        $region20: #{tpu_custom_call.1} parent=11 // pred_fallthru
          _
      $region12: #{tpu_custom_call.1} parent=5 // pred_fallthru
        _
      %p155 = scmp.lt.s32.totalorder %s15, 8
      // Predicated region
      $region21: #{tpu_custom_call.1} parent=5 // pred_check
        %p156 = pneg %p155
      $region22: #{tpu_custom_call.1} parent=5 // pred_check_branch
        %158 = sbr.rel (%p156) target = $region24
      $region23: #{tpu_custom_call.1} parent=5 // pred_region
        // Predicated region
        $region25: #{tpu_custom_call.1} parent=23 // pred_check
          %p159 = pneg %p56
        $region26: #{tpu_custom_call.1} parent=23 // pred_check_branch
          %161 = sbr.rel (%p159) target = $region28
        $region27: #{tpu_custom_call.1} parent=23 // pred_region
          %s162 = sand.u32 %s46, 1
          %s163 = scalar_lea.sflag [#allocation5], %s162
          %s164 = sand.u32 %s46, 1
          %s165 = smul.addr %s164, 128
          %s166 = scalar_lea.vmem [#allocation4], %s165
          %s168 = ssub.s32 2048, 2048
          %169 = vsyncadd %s163, %s168
          %s170 = smul.addr %s22, 32
          %s171 = sadd.s32 %s24, %s170
          %s172 = smul.addr %s171, 128
          %s173 = scalar_lea.hbm %s0, %s172
          %s174 = sshll.u32 %s166, 4
          %s175 = int_to_ptr.vmem [resolvable:$true] %s174
          %180 = dma.hbm_to_vmem [thread:$0]  %s173, 2048, %s175, %s163, 256, 128, 8
        $region28: #{tpu_custom_call.1} parent=23 // pred_fallthru
          _
      $region24: #{tpu_custom_call.1} parent=5 // pred_fallthru
        _
      %p181 = scmp.le.s32.totalorder 1, %s15
      %p182 = scmp.lt.s32.totalorder %s15, 9
      %p183 = pnand %p181, %p182
      %p184 = pneg %p183
      // Predicated region
      $region29: #{tpu_custom_call.1} parent=5 // pred_check
        _
      $region30: #{tpu_custom_call.1} parent=5 // pred_check_branch
        %186 = sbr.rel (%p183) target = $region32
      $region31: #{tpu_custom_call.1} parent=5 // pred_region
        %s187 = ssub.s32 %s15, 1
        %s188 = sand.u32 %s49, 1
        %s189 = scalar_lea.sflag [#allocation5], %s188
        %s190 = sand.u32 %s49, 1
        %s191 = smul.addr %s190, 128
        %s192 = scalar_lea.vmem [#allocation4], %s191
        // Predicated region
        $region33: #{tpu_custom_call.1} parent=31 // pred_check
          %p193 = pneg %p62
        $region34: #{tpu_custom_call.1} parent=31 // pred_check_branch
          %195 = sbr.rel (%p193) target = $region36
        $region35: #{tpu_custom_call.1} parent=31 // pred_region
          %196 = dma.done %s189, 2048
        $region36: #{tpu_custom_call.1} parent=31 // pred_fallthru
          _
        %s197 = sand.u32 %s49, 1
        %s198 = scalar_lea.sflag [#allocation5], %s197
        %s199 = sand.u32 %s49, 1
        %s200 = smul.addr %s199, 128
        %s201 = scalar_lea.vmem [#allocation4], %s200
        %p202 = pneg %p62
        %p203 = pneg %p59
        %p204 = pneg %p83
        %p205 = pneg %p80
        %p206 = pneg %p104
        %p207 = pneg %p101
        %p208 = pneg %p134
        %p209 = pneg %p131
        %s210 = sand.u32 %s121, 1
        %s211 = scalar_lea.sflag [#allocation6], %s210
        %s212 = sand.u32 %s121, 1
        %s213 = smul.addr %s212, 8
        %s214 = scalar_lea.vmem [#allocation7], %s213
        %s215 = smul.u32 %s27, %s26
        %v216 = vld [vmem:[%s2] sm:$0xff]
        %v217 = vld [vmem:[%s1] sm:$0xff]
        %v218 = vld [vmem:[%s192] sm:$0xff]
        %v219 = vld [vmem:[%s192 + $0x8] sm:$0xff]
        %v220 = vld [vmem:[%s192 + $0x10] sm:$0xff]
        %v221 = vld [vmem:[%s192 + $0x18] sm:$0xff]
        %v222 = vld [vmem:[%s192 + $0x20] sm:$0xff]
        %v223 = vld [vmem:[%s192 + $0x28] sm:$0xff]
        %v224 = vld [vmem:[%s192 + $0x30] sm:$0xff]
        %v225 = vld [vmem:[%s192 + $0x38] sm:$0xff]
        %v226 = vld [vmem:[%s192 + $0x40] sm:$0xff]
        %v227 = vld [vmem:[%s192 + $0x48] sm:$0xff]
        %v228 = vld [vmem:[%s192 + $0x50] sm:$0xff]
        %v229 = vld [vmem:[%s192 + $0x58] sm:$0xff]
        %v230 = vld [vmem:[%s192 + $0x60] sm:$0xff]
        %v231 = vld [vmem:[%s192 + $0x68] sm:$0xff]
        %v232 = vld [vmem:[%s192 + $0x70] sm:$0xff]
        %v233 = vld [vmem:[%s192 + $0x78] sm:$0xff]
        %235 = vset.pattern.permute.xlu0 0
        %236 = vperm.xlu0 %235, %v216
        %v237 = vpop.permute.xlu0 %236
        %239 = vmatprep.subr.mxu0 0.0
        %240 = vmatpush1.msra.mxu0 %v218
        %241 = vmatprep.subr.mxu0 0.0
        %242 = vmatpush1.msra.mxu0 %v219
        %243 = vmatprep.subr.mxu0 0.0
        %244 = vmatpush1.msra.mxu0 %v220
        %245 = vmatprep.subr.mxu0 0.0
        %246 = vmatpush1.msra.mxu0 %v221
        %247 = vmatprep.subr.mxu0 0.0
        %248 = vmatpush1.msra.mxu0 %v222
        %249 = vmatprep.subr.mxu0 0.0
        %250 = vmatpush1.msra.mxu0 %v223
        %251 = vmatprep.subr.mxu0 0.0
        %252 = vmatpush1.msra.mxu0 %v224
        %253 = vmatprep.subr.mxu0 0.0
        %254 = vmatpush1.msra.mxu0 %v225
        %255 = vmatprep.subr.mxu0 0.0
        %256 = vmatpush1.msra.mxu0 %v226
        %257 = vmatprep.subr.mxu0 0.0
        %258 = vmatpush1.msra.mxu0 %v227
        %259 = vmatprep.subr.mxu0 0.0
        %260 = vmatpush1.msra.mxu0 %v228
        %261 = vmatprep.subr.mxu0 0.0
        %262 = vmatpush1.msra.mxu0 %v229
        %263 = vmatprep.subr.mxu0 0.0
        %264 = vmatpush1.msra.mxu0 %v230
        %265 = vmatprep.subr.mxu0 0.0
        %266 = vmatpush1.msra.mxu0 %v231
        %267 = vmatprep.subr.mxu0 0.0
        %268 = vmatpush1.msra.mxu0 %v232
        %269 = vmatprep.subr.mxu0 0.0
        %270 = vmatpush1.msra.mxu0 %v233
        %271 = vmatprep.subr.mxu0 0.0
        %272 = vmatpush1.msra.mxu0 0.0
        %273 = vmatprep.subr.mxu0 0.0
        %274 = vmatpush1.msra.mxu0 0.0
        %275 = vmatprep.subr.mxu0 0.0
        %276 = vmatpush1.msra.mxu0 0.0
        %277 = vmatprep.subr.mxu0 0.0
        %278 = vmatpush1.msra.mxu0 0.0
        %279 = vmatprep.subr.mxu0 0.0
        %280 = vmatpush1.msra.mxu0 0.0
        %281 = vmatprep.subr.mxu0 0.0
        %282 = vmatpush1.msra.mxu0 0.0
        %283 = vmatprep.subr.mxu0 0.0
        %284 = vmatpush1.msra.mxu0 0.0
        %285 = vmatprep.subr.mxu0 0.0
        %286 = vmatpush1.msra.mxu0 0.0
        %287 = vmatprep.subr.mxu0 0.0
        %288 = vmatpush1.msra.mxu0 0.0
        %289 = vmatprep.subr.mxu0 0.0
        %290 = vmatpush1.msra.mxu0 0.0
        %291 = vmatprep.subr.mxu0 0.0
        %292 = vmatpush1.msra.mxu0 0.0
        %293 = vmatprep.subr.mxu0 0.0
        %294 = vmatpush1.msra.mxu0 0.0
        %295 = vmatprep.subr.mxu0 0.0
        %296 = vmatpush1.msra.mxu0 0.0
        %297 = vmatprep.subr.mxu0 0.0
        %298 = vmatpush1.msra.mxu0 0.0
        %299 = vmatprep.subr.mxu0 0.0
        %300 = vmatpush1.msra.mxu0 0.0
        %301 = vmatprep.subr.mxu0 0.0
        %302 = vmatpush1.msra.mxu0 0.0
        %303 = vmatprep.mubr.f32.mxu0 0.0
        %304 = vmatmul.mubr.f32.gmra.mrb[0].mxu0 %v217
        %v305 = vpop.f32.mrb[0].mxu0
        %v306 = vadd.f32 %v237, %v305
        %v307 = vpop.f32.mrb[0].mxu0
        %308 = vdwg.mxu0
        %p309 = scmp.eq.s32.totalorder %s26, 0
        %p310 = scmp.eq.s32.totalorder %s27, 0
        %p311 = pnand %p309, %p310
        %p312 = pneg %p311
        // Predicated region
        $region37: #{tpu_custom_call.1} parent=31 // pred_check
          _
        $region38: #{tpu_custom_call.1} parent=31 // pred_check_branch
          %314 = sbr.rel (%p311) target = $region40
        $region39: #{tpu_custom_call.1} parent=31 // pred_region
          %vm315 = vcmask 7168
          %316 = vst.msk [vmem:[#allocation2] sm:$0xff] %vm315, 0.0
          %317 = vst.msk [vmem:[#allocation3] sm:$0xff] %vm315, 0.0
        $region40: #{tpu_custom_call.1} parent=31 // pred_fallthru
          _
        // Predicated region
        $region41: #{tpu_custom_call.1} parent=31 // pred_check
          %p318 = pneg %p309
        $region42: #{tpu_custom_call.1} parent=31 // pred_check_branch
          %320 = sbr.rel (%p318) target = $region44
        $region43: #{tpu_custom_call.1} parent=31 // pred_region
          %v321 = vlaneseq
          %v322 = vand.u32 %v321, 127
          %s323 = smul.u32 %s27, 128
          %v324 = vstv %s323
          %v325 = vadd.s32 %v322, %v324
          %vm326 = vcmp.lt.s32.totalorder %v325, 216
          %v327 = vsel %vm326, %v306, 0.0
          %v328 = vld [vmem:[#allocation2] sm:$0xff]
          %329 = vadd.xlane.f32.xlu0 %v327
          %v330 = vpop.xlane.xlu0 %329
          %v331 = vadd.f32 %v328, %v330
          %vm332 = vcmask 7168
          %333 = vst.msk [vmem:[#allocation2] sm:$0xff] %vm332, %v331
          %v334 = vld [vmem:[#allocation3] sm:$0xff]
          %v335 = vmul.f32 %v327, %v327
          %336 = vadd.xlane.f32.xlu0 %v335
          %v337 = vpop.xlane.xlu0 %336
          %v338 = vadd.f32 %v334, %v337
          %339 = vst.msk [vmem:[#allocation3] sm:$0xff] %vm332, %v338
        $region44: #{tpu_custom_call.1} parent=31 // pred_fallthru
          _
        %p340 = scmp.eq.s32.totalorder %s26, 1
        // Predicated region
        $region45: #{tpu_custom_call.1} parent=31 // pred_check
          %p341 = pneg %p340
        $region46: #{tpu_custom_call.1} parent=31 // pred_check_branch
          %343 = sbr.rel (%p341) target = $region48
        $region47: #{tpu_custom_call.1} parent=31 // pred_region
          %v344 = vld [vmem:[%s2] sm:$0xff]
          %v345 = vld [vmem:[#allocation2] sm:$0xff]
          %vm346 = vcmask 7168
          %v347 = vsel %vm346, %v345, 0.0
          %v348 = vrot.slane %v347, 4
          %v349 = vadd.f32 %v347, %v348
          %v350 = vrot.slane %v349, 2
          %v351 = vadd.f32 %v349, %v350
          %v352 = vrot.slane %v351, 1
          %v353 = vadd.f32 %v351, %v352
          %v354 = vld [vmem:[#allocation3] sm:$0xff]
          %v355 = vsel %vm346, %v354, 0.0
          %v356 = vrot.slane %v355, 4
          %v357 = vadd.f32 %v355, %v356
          %v358 = vrot.slane %v357, 2
          %v359 = vadd.f32 %v357, %v358
          %v360 = vrot.slane %v359, 1
          %v361 = vadd.f32 %v359, %v360
          %v362 = vmul.f32 %v353, 0.0005787037
          %v363 = vmul.f32 %v353, %v362
          %v364 = vsub.f32 %v361, %v363
          %v365 = vmul.f32 %v364, 0.0005790388
          %v366 = vrsqrt.pop %v365
          %v367 = vmul.f32 %v365, %v366
          %vm368 = vcmp.eq.f32.partialorder %v365, inf
          %v369 = vsel %vm368, %v365, %v367
          %vm370 = vcmp.eq.f32.partialorder %v365, 0.0
          %v371 = vand.u32 %v365, 2147483648
          %v372 = vsel %vm370, %v371, %v369
          %v373 = vadd.f32 %v372, 1e-05
          %v374 = vadd.f32 %v373, 0.0
          %v375 = vrcp.pop %v374
          %v376 = vmul.f32 %v374, %v375
          %v377 = vsub.f32 2.0, %v376
          %v378 = vmul.f32 %v375, %v377
          %380 = vrot.lane.b32.xlu0 %v378, 1
          %v381 = vpop.permute.xlu0 %380
          %v383 = vmul.f32 %v344, %v381
          %385 = vrot.lane.b32.xlu0 %v362, 1
          %v386 = vpop.permute.xlu0 %385
          %v388 = vmul.f32 %v383, %v386
          %390 = vrot.lane.b32.xlu0 %v388, 1
          %v391 = vpop.permute.xlu0 %390
          %v393 = vsub.f32 %v344, %v391
          %395 = vset.pattern.permute.xlu0 1
          %396 = vperm.xlu0 %395, %v383
          %v397 = vpop.permute.xlu0 %396
          %v399 = vmul.f32 %v306, %v397
          %401 = vset.pattern.permute.xlu0 2
          %402 = vperm.xlu0 %401, %v393
          %v403 = vpop.permute.xlu0 %402
          %v405 = vadd.f32 %v399, %v403
          %vm406 = vcmp.gt.f32.partialorder %v405, 0.0
          %v407 = vmul.f32 %v405, 0.01
          %v408 = vsel %vm406, %v405, %v407
          %409 = vst [vmem:[%s214] sm:$0xff] %v408
        $region48: #{tpu_custom_call.1} parent=31 // pred_fallthru
          _
        %s410 = sand.u32 %s121, 1
        %s411 = scalar_lea.sflag [#allocation6], %s410
        %s412 = sand.u32 %s121, 1
        %s413 = smul.addr %s412, 8
        %s414 = scalar_lea.vmem [#allocation7], %s413
        // Predicated region
        $region49: #{tpu_custom_call.1} parent=31 // pred_check
          %p415 = pneg %p131
        $region50: #{tpu_custom_call.1} parent=31 // pred_check_branch
          %417 = sbr.rel (%p415) target = $region52
        $region51: #{tpu_custom_call.1} parent=31 // pred_region
          %s418 = smul.u32 %s27, %s26
          %s420 = ssub.s32 128, 128
          %421 = vsyncadd %s411, %s420
          %s422 = smul.addr %s25, 2
          %s423 = sadd.s32 %s418, %s422
          %s424 = smul.addr %s423, 128
          %s425 = scalar_lea.hbm %s3, %s424
          %s427 = sshll.u32 %s414, 4
          %s428 = int_to_ptr.vmem [resolvable:$true] %s427
          %430 = dma.vmem_to_hbm [thread:$0]  %s428, 128, %s425, %s411
        $region52: #{tpu_custom_call.1} parent=31 // pred_fallthru
          _
      $region32: #{tpu_custom_call.1} parent=5 // pred_fallthru
        _
      %p431 = scmp.le.s32.totalorder 2, %s15
      // Predicated region
      $region53: #{tpu_custom_call.1} parent=5 // pred_check
        %p432 = pneg %p431
      $region54: #{tpu_custom_call.1} parent=5 // pred_check_branch
        %434 = sbr.rel (%p432) target = $region56
      $region55: #{tpu_custom_call.1} parent=5 // pred_region
        %s435 = ssub.s32 %s15, 2
        // Predicated region
        $region57: #{tpu_custom_call.1} parent=55 // pred_check
          %p436 = pneg %p137
        $region58: #{tpu_custom_call.1} parent=55 // pred_check_branch
          %438 = sbr.rel (%p436) target = $region60
        $region59: #{tpu_custom_call.1} parent=55 // pred_region
          %s439 = sand.u32 %s122, 1
          %s440 = scalar_lea.sflag [#allocation6], %s439
          %s441 = sand.u32 %s122, 1
          %s442 = smul.addr %s441, 8
          %s443 = scalar_lea.vmem [#allocation7], %s442
          %444 = dma.done %s440, 128
        $region60: #{tpu_custom_call.1} parent=55 // pred_fallthru
          _
      $region56: #{tpu_custom_call.1} parent=5 // pred_fallthru
        _
    $region6: #{tpu_custom_call.1} parent=1 // loop_footer
      %s19 = sadd.s32 1, %s15
    $region7: #{tpu_custom_call.1} parent=1 // loop_footer_branch
      %14 = sbr.rel target = $region3
    $region8: #{tpu_custom_call.1} parent=1 // loop_exit
      _
    %445 = vsyncpa [#allocation5], 1
    %s446 = scalar_lea.sflag [#allocation5], 1
    %447 = vsyncpa %s446, 1
    %448 = vsyncpa [#allocation6], 1
    %s449 = scalar_lea.sflag [#allocation6], 1
    %450 = vsyncpa %s449, 1

</llo_original>
